<compile_context>
chip_gen: v7x
topology: tpu7x:2x2x1
jax: 0.10.0
libtpu: 0.0.40
codegen_flags: <defaults>
</compile_context>

<pallas_src>
import numpy as np
import jax
import jax.numpy as jnp
from jax import lax
from jax.experimental import pallas as pl
from jax.experimental.pallas import tpu as pltpu


RIM = 8       # stencil rim hard-coded as [8:-8] in the torch module
LANE = 128    # TPU lane width (pad last axis to a multiple of this)


def _round_up(a, b):
    return ((a + b - 1) // b) * b


# ----------------------------------------------------------------------------
# PML extension of the velocity model (mirrors the torch code exactly).
# ----------------------------------------------------------------------------
def extend_with_pml(v, p):
    ny, nx = v.shape
    ext = jnp.zeros((ny + 2 * p, nx + 2 * p), v.dtype)
    ext = ext.at[p:-p, p:-p].set(v)
    ext = ext.at[:p, p:-p].set(jnp.broadcast_to(v[0, :][None, :], (p, nx)))
    ext = ext.at[-p:, p:-p].set(0.0)
    ext = ext.at[p:-p, :p].set(jnp.broadcast_to(v[:, 0][:, None], (ny, p)))
    ext = ext.at[p:-p, -p:].set(jnp.broadcast_to(v[:, -1][:, None], (ny, p)))
    ext = ext.at[:p, :p].set(v[0, 0])
    ext = ext.at[-p:, :p].set(v[-1, 0])
    ext = ext.at[:p, -p:].set(v[0, -1])
    ext = ext.at[-p:, -p:].set(v[-1, -1])
    return ext


# ----------------------------------------------------------------------------
# Fused multi-step wave kernel builder.
# ----------------------------------------------------------------------------
def _build_wave_kernel(N, Mp, NI, MI, nx, pml, dx, nsteps):
    """pallas_call running `nsteps` fused leapfrog steps on the padded grid.

    Inputs  : t0 (i32[1], SMEM), src_scaled (f32[nsrc], SMEM),
              p1, p2        f32[N, Mp]   initial fields (lane padded)
              alpha_int     f32[NI, Mp]  (v**2 dt**2) on the stencil-interior rows
              D             f32[Mp, Mp]  banded lane-direction 2nd-difference matrix
              onehot        f32[NI, Mp]  1.0 at the source cell
    Outputs : p_final       f32[N, Mp]   field after the last step
              trace         f32[nsteps*nx, 1]  res[:, 50] per step
    """
    dtype = jnp.float32
    inv_dx2 = 1.0 / (float(dx) * float(dx))
    trace_col = pml + 50          # torch: res[:, 50] -> column pml+50 of p
    trow0 = pml - RIM             # offset of res-rows inside the stencil interior

    def kernel(t_ref, src_ref,                                  # SMEM prefetch
               p1_ref, p2_ref, alpha_ref, d_ref, onehot_ref,    # VMEM inputs
               pfin_ref, trace_ref,                             # VMEM outputs
               bufA, bufB):                                     # VMEM scratch
        i = pl.program_id(0)

        # Initialise the resident leapfrog state once (inputs DMA'd once).
        @pl.when(i == 0)
        def _():
            bufA[...] = p1_ref[...]
            bufB[...] = p2_ref[...]

        src = src_ref[t_ref[0] + i]            # source_function[t] * dt**2
        alpha = alpha_ref[...]                 # (NI, Mp)
        d_mat = d_ref[...]                     # (Mp, Mp)
        onehot = onehot_ref[...]               # (NI, Mp)

        # Tiny (1, Mp) lane masks -- negligible VALU work, broadcast below.
        col = lax.broadcasted_iota(jnp.int32, (1, Mp), 1)
        colmask = jnp.logical_and(col >= RIM, col < RIM + MI).astype(dtype)
        tsel = (col == trace_col).astype(dtype)

        def do_step(prev_ref, cur_ref):
            p1 = prev_ref[...]
            p2 = cur_ref[...]
            mid = p2[RIM:RIM + NI, :]                 # rows 8 .. N-9 (aligned)
            top = p2[RIM - 1:RIM - 1 + NI, :]         # rows 7 .. N-10
            bot = p2[RIM + 1:RIM + 1 + NI, :]         # rows 9 .. N-8

            # x (lane) second difference on the MXU via the banded matrix.
            dpdx = jnp.dot(mid, d_mat, preferred_element_type=jnp.float32)
            # y (sublane) second difference with shifted row slices (VPU).
            dpdy = (bot - 2.0 * mid + top) * inv_dx2

            rhs = 2.0 * mid - p1[RIM:RIM + NI, :] + alpha * (dpdx + dpdy)
            # Zero the stencil-rim columns and inject the point source in one go.
            new_int = colmask * rhs + src * onehot            # (NI, Mp)

            # Seismogram trace: column `trace_col` over the physical rows.
            trace_ref[...] = jnp.sum(new_int[trow0:trow0 + nx, :] * tsel,
                                     axis=1, keepdims=True)

            # Update the resident state; rim rows are exactly zero.
            zrim = jnp.zeros((RIM, Mp), dtype)
            prev_ref[pl.ds(0, RIM), :] = zrim
            prev_ref[pl.ds(RIM, NI), :] = new_int
            prev_ref[pl.ds(RIM + NI, RIM), :] = zrim

            # Write the final pressure field only on the last step.
            @pl.when(i == nsteps - 1)
            def _():
                pfin_ref[pl.ds(0, RIM), :] = zrim
                pfin_ref[pl.ds(RIM, NI), :] = new_int
                pfin_ref[pl.ds(RIM + NI, RIM), :] = zrim

        parity = i % 2

        @pl.when(parity == 0)
        def _():
            do_step(bufA, bufB)     # prev = bufA, cur = bufB, new -> bufA

        @pl.when(parity == 1)
        def _():
            do_step(bufB, bufA)

    grid_spec = pltpu.PrefetchScalarGridSpec(
        num_scalar_prefetch=2,
        grid=(nsteps,),
        in_specs=[
            pl.BlockSpec((N, Mp), lambda i, t, s: (0, 0)),      # p1 (initial)
            pl.BlockSpec((N, Mp), lambda i, t, s: (0, 0)),      # p2 (initial)
            pl.BlockSpec((NI, Mp), lambda i, t, s: (0, 0)),     # alpha (interior rows)
            pl.BlockSpec((Mp, Mp), lambda i, t, s: (0, 0)),     # D
            pl.BlockSpec((NI, Mp), lambda i, t, s: (0, 0)),     # source one-hot
        ],
        out_specs=[
            pl.BlockSpec((N, Mp), lambda i, t, s: (0, 0)),      # final field
            pl.BlockSpec((nx, 1), lambda i, t, s: (i, 0)),      # per-step trace
        ],
        scratch_shapes=[
            pltpu.VMEM((N, Mp), dtype),                         # ping-pong state
            pltpu.VMEM((N, Mp), dtype),
        ],
    )

    return pl.pallas_call(
        kernel,
        out_shape=(
            jax.ShapeDtypeStruct((N, Mp), dtype),
            jax.ShapeDtypeStruct((nsteps * nx, 1), dtype),
        ),
        grid_spec=grid_spec,
        compiler_params=pltpu.CompilerParams(
            dimension_semantics=("arbitrary",)),     # sequential time loop
    )


# ----------------------------------------------------------------------------
# JAX/Pallas port of the PyTorch CustomRNN forward pass.
# ----------------------------------------------------------------------------
class CustomRNNPallas:
    def __init__(self, nx=64, ny=64, dt=0.0005, nt=1000, dx=10,
                 pml_width=8, pml_decay=1.0,
                 source_function=None, varray_init=None):
        self.nx, self.ny = int(nx), int(ny)
        self.dt, self.dx, self.nt = float(dt), float(dx), int(nt)
        self.pml_width = int(pml_width)
        self.pml_decay = pml_decay      # unused (mirrors the torch module)

        if varray_init is not None:
            self.varray = jnp.asarray(varray_init, jnp.float32)
        else:
            self.varray = jnp.ones((self.nx, self.ny), jnp.float32)
        if source_function is None:
            self.source_function = jnp.zeros(500, jnp.float32)
        else:
            self.source_function = jnp.asarray(source_function, jnp.float32)

        self.N = self.nx + 2 * self.pml_width         # extended rows
        self.M = self.ny + 2 * self.pml_width         # extended cols
        self.Mp = _round_up(self.M, LANE)             # lane-padded cols
        self.NI = self.N - 2 * RIM                    # stencil-interior rows
        self.MI = self.M - 2 * RIM                    # stencil-interior cols
        assert self.pml_width >= RIM, "source must land inside the stencil interior"

        # ----- static precomputation (hoisted out of forward) --------------
        self.pml_varray = extend_with_pml(self.varray, self.pml_width)
        alpha = (self.pml_varray ** 2 * self.dt ** 2).astype(jnp.float32)
        alpha_pad = jnp.zeros((self.N, self.Mp), jnp.float32).at[:, :self.M].set(alpha)
        self.alpha_int = alpha_pad[RIM:RIM + self.NI, :]

        # CFL stability check (torch does it every forward and exits).
        DIFF_COEFF = np.array([0, 1.261138, -0.1297359, 0.03989181, -0.01590804,
                               0.006780797, -0.002804773, 0.001034639,
                               -0.0002505054])
        limit = (float(jnp.max(self.pml_varray)) * self.dt
                 * np.sqrt(2.0 / (self.dx * self.dx)) * np.sum(np.fabs(DIFF_COEFF)))
        if limit > 1:
            raise RuntimeError(f"CFL stability condition violated: limit={limit}")

        # Banded second-difference matrix for the lane (x / column) direction.
        inv_dx2 = 1.0 / (self.dx * self.dx)
        Dnp = np.zeros((self.Mp, self.Mp), np.float32)
        for j in range(RIM, RIM + self.MI):
            Dnp[j - 1, j] += inv_dx2
            Dnp[j, j] += -2.0 * inv_dx2
            Dnp[j + 1, j] += inv_dx2
        self.D = jnp.asarray(Dnp)

        self.src_scaled = (self.source_function * (self.dt ** 2)).astype(jnp.float32)
        self._steppers = {}

    # ---- helpers ----------------------------------------------------------
    def _pad_lanes(self, a):
        return jnp.zeros((self.N, self.Mp), jnp.float32).at[:, :self.M].set(
            jnp.asarray(a, jnp.float32))

    def _onehot_source(self, x_s, y_s):
        row = x_s + self.pml_width - RIM      # row inside the stencil interior
        colj = y_s + self.pml_width           # column in the padded frame
        return jnp.zeros((self.NI, self.Mp), jnp.float32).at[row, colj].set(1.0)

    def _stepper(self, nsteps):
        if nsteps not in self._steppers:
            self._steppers[nsteps] = _build_wave_kernel(
                self.N, self.Mp, self.NI, self.MI, self.nx,
                self.pml_width, self.dx, nsteps)
        return self._steppers[nsteps]

    def _run(self, x, t0, nsteps, p1, p2):
        x_s, y_s = x
        p1p = self._pad_lanes(p1)
        p2p = self._pad_lanes(p2)
        onehot = self._onehot_source(x_s, y_s)
        t_arr = jnp.asarray([t0], jnp.int32)
        p_pad, traces = self._stepper(nsteps)(
            t_arr, self.src_scaled, p1p, p2p, self.alpha_int, self.D, onehot)
        return p_pad[:, :self.M], traces

    # ---- public API -------------------------------------------------------
    def __call__(self, x, t, p1, p2):
        """One leapfrog step -- same signature/return as CustomRNN.forward."""
        p, trace = self._run(x, t, 1, p1, p2)
        return p, trace.reshape(self.nx)

    def simulate(self, x, t0, nsteps, p1, p2):
        """`nsteps` leapfrog steps fused inside a single pallas_call.
        Returns (final field, traces[nsteps, nx])."""
        p, traces = self._run(x, t0, nsteps, p1, p2)
        return p, traces.reshape(nsteps, self.nx)


# ----------------------------------------------------------------------------
# Pure-JAX reference (numerical verification only).
# ----------------------------------------------------------------------------
def _reference_step(pml_varray, source_function, dt, dx, pml, x, t, p1, p2):
    x_s, y_s = x
    alpha = pml_varray ** 2 * dt ** 2
    dpdx = (p2[:, 9:-7] - 2 * p2[:, 8:-8] + p2[:, 7:-9]) / dx ** 2
    dpdy = (p2[9:-7, :] - 2 * p2[8:-8, :] + p2[7:-9, :]) / dx ** 2
    rhs = (2 * p2[8:-8, 8:-8] - p1[8:-8, 8:-8]
           + alpha[8:-8, 8:-8] * (dpdx[8:-8, :] + dpdy[:, 8:-8]))
    p = jnp.zeros_like(p1).at[8:-8, 8:-8].set(rhs)
    p = p.at[x_s + pml, y_s + pml].add(source_function[t] * dt ** 2)
    res = p[pml:-pml, pml:-pml]
    return p, res[:, 50]


if __name__ == "__main__":
    nx, ny, pml = 64, 64, 8
    N, M = nx + 2 * pml, ny + 2 * pml

    key = jax.random.PRNGKey(0)
    k1, k2, k3 = jax.random.split(key, 3)

    varray = 1.0 + 0.05 * jax.random.uniform(k1, (nx, ny), dtype=jnp.float32)
    source_fn = (10.0 * jnp.sin(0.1 * jnp.arange(500))).astype(jnp.float32)
    p1 = 0.01 * jax.random.normal(k2, (N, M), dtype=jnp.float32)
    p2 = 0.01 * jax.random.normal(k3, (N, M), dtype=jnp.float32)

    model = CustomRNNPallas(nx=nx, ny=ny, dt=0.0005, dx=10, pml_width=pml,
                            source_function=source_fn, varray_init=varray)

    x_src, y_src, t0 = 20, 30, 7

    # --- single step (== CustomRNN.forward) ---------------------------------
    p_out, trace = model((x_src, y_src), t0, p1, p2)
    p_out = jax.block_until_ready(p_out)
    trace = jax.block_until_ready(trace)

    p_ref, trace_ref = _reference_step(model.pml_varray, source_fn, model.dt,
                                       model.dx, pml, (x_src, y_src), t0, p1, p2)
    np.testing.assert_allclose(np.asarray(p_out), np.asarray(p_ref),
                               rtol=1e-5, atol=1e-6)
    np.testing.assert_allclose(np.asarray(trace), np.asarray(trace_ref),
                               rtol=1e-5, atol=1e-6)

    # --- fused multi-step (time loop inside one pallas_call) ----------------
    nsteps = 6
    p_fin, traces = model.simulate((x_src, y_src), t0, nsteps, p1, p2)
    p_fin = jax.block_until_ready(p_fin)
    traces = jax.block_until_ready(traces)

    pp1, pp2 = p1, p2
    ref_traces = []
    for i in range(nsteps):
        p_new, tr = _reference_step(model.pml_varray, source_fn, model.dt,
                                    model.dx, pml, (x_src, y_src), t0 + i, pp1, pp2)
        ref_traces.append(tr)
        pp1, pp2 = pp2, p_new
    np.testing.assert_allclose(np.asarray(p_fin), np.asarray(pp2),
                               rtol=1e-5, atol=1e-6)
    np.testing.assert_allclose(np.asarray(traces),
                               np.asarray(jnp.stack(ref_traces)),
                               rtol=1e-5, atol=1e-6)

    print("KERNEL_OK")
</pallas_src>

<mosaic_0001>
module attributes {stable_mosaic.version = 11 : i64} {
  func.func @kernel(%arg0: i32, %arg1: memref<1xi32, #tpu.memory_space<smem>>, %arg2: memref<500xf32, #tpu.memory_space<smem>>, %arg3: memref<80x128xf32, #tpu.memory_space<vmem>>, %arg4: memref<80x128xf32, #tpu.memory_space<vmem>>, %arg5: memref<64x128xf32, #tpu.memory_space<vmem>>, %arg6: memref<128x128xf32, #tpu.memory_space<vmem>>, %arg7: memref<64x128xf32, #tpu.memory_space<vmem>>, %arg8: memref<80x128xf32, #tpu.memory_space<vmem>>, %arg9: memref<64x1xf32, #tpu.memory_space<vmem>>, %arg10: memref<80x128xf32, #tpu.memory_space<vmem>>, %arg11: memref<80x128xf32, #tpu.memory_space<vmem>>) attributes {dimension_semantics = [#tpu.dimension_semantics<arbitrary>], iteration_bounds = array<i64: 1>, scalar_prefetch = 2 : i64, scratch_operands = 2 : i64, tpu.core_type = #tpu.core_type<tc>, window_params = [{pipeline_mode = #tpu.pipeline_mode<synchronous>, transform_indices = @transform_0, window_bounds = array<i64: 80, 128>}, {pipeline_mode = #tpu.pipeline_mode<synchronous>, transform_indices = @transform_1, window_bounds = array<i64: 80, 128>}, {pipeline_mode = #tpu.pipeline_mode<synchronous>, transform_indices = @transform_2, window_bounds = array<i64: 64, 128>}, {pipeline_mode = #tpu.pipeline_mode<synchronous>, transform_indices = @transform_3, window_bounds = array<i64: 128, 128>}, {pipeline_mode = #tpu.pipeline_mode<synchronous>, transform_indices = @transform_4, window_bounds = array<i64: 64, 128>}, {pipeline_mode = #tpu.pipeline_mode<synchronous>, transform_indices = @transform_5, window_bounds = array<i64: 80, 128>}, {transform_indices = @transform_6, window_bounds = array<i64: 64, 1>}]} {
    %c0_i32 = arith.constant 0 : i32
    %0 = arith.cmpi eq, %arg0, %c0_i32 : i32
    %1 = arith.extui %0 : i1 to i32
    %c0_i32_0 = arith.constant 0 : i32
    %2 = arith.cmpi ne, %1, %c0_i32_0 : i32
    scf.if %2 {
      %c0_15 = arith.constant 0 : index
      %c0_16 = arith.constant 0 : index
      %38 = vector.load %arg3[%c0_15, %c0_16] : memref<80x128xf32, #tpu.memory_space<vmem>>, vector<80x128xf32>
      %c0_17 = arith.constant 0 : index
      %c0_18 = arith.constant 0 : index
      %39 = vector.load %arg10[%c0_17, %c0_18] : memref<80x128xf32, #tpu.memory_space<vmem>>, vector<80x128xf32>
      tpu.vector_store %arg10[%c0_17, %c0_18], %38 {strides = array<i32>} : memref<80x128xf32, #tpu.memory_space<vmem>>, vector<80x128xf32>,
      %c0_19 = arith.constant 0 : index
      %c0_20 = arith.constant 0 : index
      %40 = vector.load %arg4[%c0_19, %c0_20] : memref<80x128xf32, #tpu.memory_space<vmem>>, vector<80x128xf32>
      %c0_21 = arith.constant 0 : index
      %c0_22 = arith.constant 0 : index
      %41 = vector.load %arg11[%c0_21, %c0_22] : memref<80x128xf32, #tpu.memory_space<vmem>>, vector<80x128xf32>
      tpu.vector_store %arg11[%c0_21, %c0_22], %40 {strides = array<i32>} : memref<80x128xf32, #tpu.memory_space<vmem>>, vector<80x128xf32>,
    } else {
    }
    %c0 = arith.constant 0 : index
    %3 = memref.load %arg1[%c0] : memref<1xi32, #tpu.memory_space<smem>>
    %4 = arith.addi %3, %arg0 : i32
    %5 = arith.index_cast %4 : i32 to index
    %6 = memref.load %arg2[%5] : memref<500xf32, #tpu.memory_space<smem>>
    %c0_1 = arith.constant 0 : index
    %c0_2 = arith.constant 0 : index
    %7 = vector.load %arg5[%c0_1, %c0_2] : memref<64x128xf32, #tpu.memory_space<vmem>>, vector<64x128xf32>
    %c0_3 = arith.constant 0 : index
    %c0_4 = arith.constant 0 : index
    %8 = vector.load %arg6[%c0_3, %c0_4] : memref<128x128xf32, #tpu.memory_space<vmem>>, vector<128x128xf32>
    %c0_5 = arith.constant 0 : index
    %c0_6 = arith.constant 0 : index
    %9 = vector.load %arg7[%c0_5, %c0_6] : memref<64x128xf32, #tpu.memory_space<vmem>>, vector<64x128xf32>
    %10 = tpu.iota {dimensions = array<i32: 1>} : vector<1x128xi32>
    %c8_i32 = arith.constant 8 : i32
    %11 = vector.broadcast %c8_i32 : i32 to vector<1x128xi32>
    %12 = arith.cmpi sge, %10, %11 : vector<1x128xi32>
    %c72_i32 = arith.constant 72 : i32
    %13 = vector.broadcast %c72_i32 : i32 to vector<1x128xi32>
    %14 = arith.cmpi slt, %10, %13 : vector<1x128xi32>
    %15 = arith.andi %12, %14 : vector<1x128xi1>
    %16 = arith.extui %15 : vector<1x128xi1> to vector<1x128xi32>
    %17 = arith.sitofp %16 : vector<1x128xi32> to vector<1x128xf32>
    %c58_i32 = arith.constant 58 : i32
    %18 = vector.broadcast %c58_i32 : i32 to vector<1x128xi32>
    %19 = arith.cmpi eq, %10, %18 : vector<1x128xi32>
    %20 = arith.extui %19 : vector<1x128xi1> to vector<1x128xi32>
    %21 = arith.sitofp %20 : vector<1x128xi32> to vector<1x128xf32>
    %c2_i32 = arith.constant 2 : i32
    %c0_i32_7 = arith.constant 0 : i32
    %22 = arith.cmpi eq, %c2_i32, %c0_i32_7 : i32
    %c1_i32 = arith.constant 1 : i32
    %23 = arith.select %22, %c1_i32, %c2_i32 : i32
    %24 = arith.remsi %arg0, %23 : i32
    %c0_i32_8 = arith.constant 0 : i32
    %25 = arith.cmpi ne, %24, %c0_i32_8 : i32
    %c0_i32_9 = arith.constant 0 : i32
    %26 = arith.cmpi slt, %24, %c0_i32_9 : i32
    %c0_i32_10 = arith.constant 0 : i32
    %27 = arith.cmpi slt, %23, %c0_i32_10 : i32
    %28 = arith.xori %26, %27 : i1
    %29 = arith.andi %28, %25 : i1
    %30 = arith.addi %24, %23 : i32
    %31 = arith.select %29, %30, %24 : i32
    %c0_i32_11 = arith.constant 0 : i32
    %32 = arith.cmpi eq, %31, %c0_i32_11 : i32
    %33 = arith.extui %32 : i1 to i32
    %c0_i32_12 = arith.constant 0 : i32
    %34 = arith.cmpi ne, %33, %c0_i32_12 : i32
    scf.if %34 {
      %c0_15 = arith.constant 0 : index
      %c0_16 = arith.constant 0 : index
      %38 = vector.load %arg10[%c0_15, %c0_16] : memref<80x128xf32, #tpu.memory_space<vmem>>, vector<80x128xf32>
      %c0_17 = arith.constant 0 : index
      %c0_18 = arith.constant 0 : index
      %39 = vector.load %arg11[%c0_17, %c0_18] : memref<80x128xf32, #tpu.memory_space<vmem>>, vector<80x128xf32>
      %40 = vector.extract_strided_slice %39 {offsets = [8, 0], sizes = [64, 128], strides = [1, 1]} : vector<80x128xf32> to vector<64x128xf32>
      %41 = vector.extract_strided_slice %39 {offsets = [7, 0], sizes = [64, 128], strides = [1, 1]} : vector<80x128xf32> to vector<64x128xf32>
      %42 = vector.extract_strided_slice %39 {offsets = [9, 0], sizes = [64, 128], strides = [1, 1]} : vector<80x128xf32> to vector<64x128xf32>
      %cst = arith.constant dense<0.000000e+00> : vector<64x128xf32>
      %43 = tpu.matmul %40, %8, %cst {dimension_numbers = #tpu.dot_dimension_numbers<[1], [0], [0], [1], [0, 0, 1, 1], [], []>} : vector<64x128xf32>, vector<128x128xf32>, vector<64x128xf32> -> vector<64x128xf32>
      %cst_19 = arith.constant 2.000000e+00 : f32
      %44 = vector.broadcast %cst_19 : f32 to vector<64x128xf32>
      %45 = arith.mulf %44, %40 : vector<64x128xf32>
      %46 = arith.subf %42, %45 : vector<64x128xf32>
      %47 = arith.addf %46, %41 : vector<64x128xf32>
      %cst_20 = arith.constant 0.00999999977 : f32
      %48 = vector.broadcast %cst_20 : f32 to vector<64x128xf32>
      %49 = arith.mulf %47, %48 : vector<64x128xf32>
      %cst_21 = arith.constant 2.000000e+00 : f32
      %50 = vector.broadcast %cst_21 : f32 to vector<64x128xf32>
      %51 = arith.mulf %50, %40 : vector<64x128xf32>
      %52 = vector.extract_strided_slice %38 {offsets = [8, 0], sizes = [64, 128], strides = [1, 1]} : vector<80x128xf32> to vector<64x128xf32>
      %53 = arith.subf %51, %52 : vector<64x128xf32>
      %54 = arith.addf %43, %49 : vector<64x128xf32>
      %55 = arith.mulf %7, %54 : vector<64x128xf32>
      %56 = arith.addf %53, %55 : vector<64x128xf32>
      %57 = vector.broadcast %17 : vector<1x128xf32> to vector<64x128xf32>
      %58 = arith.mulf %57, %56 : vector<64x128xf32>
      %59 = vector.broadcast %6 : f32 to vector<64x128xf32>
      %60 = arith.mulf %59, %9 : vector<64x128xf32>
      %61 = arith.addf %58, %60 : vector<64x128xf32>
      %62 = vector.broadcast %21 : vector<1x128xf32> to vector<64x128xf32>
      %63 = arith.mulf %61, %62 : vector<64x128xf32>
      %cst_22 = arith.constant dense<0.000000e+00> : vector<64xf32>
      %64 = vector.multi_reduction <add>, %63, %cst_22 [1] : vector<64x128xf32> to vector<64xf32>
      %65 = vector.shape_cast %64 : vector<64xf32> to vector<64x1xf32>
      %c0_23 = arith.constant 0 : index
      %c0_24 = arith.constant 0 : index
      %66 = vector.load %arg9[%c0_23, %c0_24] : memref<64x1xf32, #tpu.memory_space<vmem>>, vector<64x1xf32>
      tpu.vector_store %arg9[%c0_23, %c0_24], %65 {strides = array<i32>} : memref<64x1xf32, #tpu.memory_space<vmem>>, vector<64x1xf32>,
      %cst_25 = arith.constant 0.000000e+00 : f32
      %67 = vector.broadcast %cst_25 : f32 to vector<8x128xf32>
      %c0_26 = arith.constant 0 : index
      %c0_27 = arith.constant 0 : index
      %68 = vector.load %arg10[%c0_26, %c0_27] : memref<80x128xf32, #tpu.memory_space<vmem>>, vector<8x128xf32>
      tpu.vector_store %arg10[%c0_26, %c0_27], %67 {strides = array<i32>} : memref<80x128xf32, #tpu.memory_space<vmem>>, vector<8x128xf32>,
      %c8 = arith.constant 8 : index
      %c0_28 = arith.constant 0 : index
      %69 = vector.load %arg10[%c8, %c0_28] : memref<80x128xf32, #tpu.memory_space<vmem>>, vector<64x128xf32>
      tpu.vector_store %arg10[%c8, %c0_28], %61 {strides = array<i32>} : memref<80x128xf32, #tpu.memory_space<vmem>>, vector<64x128xf32>,
      %c72 = arith.constant 72 : index
      %c0_29 = arith.constant 0 : index
      %70 = vector.load %arg10[%c72, %c0_29] : memref<80x128xf32, #tpu.memory_space<vmem>>, vector<8x128xf32>
      tpu.vector_store %arg10[%c72, %c0_29], %67 {strides = array<i32>} : memref<80x128xf32, #tpu.memory_space<vmem>>, vector<8x128xf32>,
      %c0_i32_30 = arith.constant 0 : i32
      %71 = arith.cmpi eq, %arg0, %c0_i32_30 : i32
      %72 = arith.extui %71 : i1 to i32
      %c0_i32_31 = arith.constant 0 : i32
      %73 = arith.cmpi ne, %72, %c0_i32_31 : i32
      scf.if %73 {
        %c0_32 = arith.constant 0 : index
        %c0_33 = arith.constant 0 : index
        %74 = vector.load %arg8[%c0_32, %c0_33] : memref<80x128xf32, #tpu.memory_space<vmem>>, vector<8x128xf32>
        tpu.vector_store %arg8[%c0_32, %c0_33], %67 {strides = array<i32>} : memref<80x128xf32, #tpu.memory_space<vmem>>, vector<8x128xf32>,
        %c8_34 = arith.constant 8 : index
        %c0_35 = arith.constant 0 : index
        %75 = vector.load %arg8[%c8_34, %c0_35] : memref<80x128xf32, #tpu.memory_space<vmem>>, vector<64x128xf32>
        tpu.vector_store %arg8[%c8_34, %c0_35], %61 {strides = array<i32>} : memref<80x128xf32, #tpu.memory_space<vmem>>, vector<64x128xf32>,
        %c72_36 = arith.constant 72 : index
        %c0_37 = arith.constant 0 : index
        %76 = vector.load %arg8[%c72_36, %c0_37] : memref<80x128xf32, #tpu.memory_space<vmem>>, vector<8x128xf32>
        tpu.vector_store %arg8[%c72_36, %c0_37], %67 {strides = array<i32>} : memref<80x128xf32, #tpu.memory_space<vmem>>, vector<8x128xf32>,
      } else {
      }
    } else {
    }
    %c1_i32_13 = arith.constant 1 : i32
    %35 = arith.cmpi eq, %31, %c1_i32_13 : i32
    %36 = arith.extui %35 : i1 to i32
    %c0_i32_14 = arith.constant 0 : i32
    %37 = arith.cmpi ne, %36, %c0_i32_14 : i32
    scf.if %37 {
      %c0_15 = arith.constant 0 : index
      %c0_16 = arith.constant 0 : index
      %38 = vector.load %arg11[%c0_15, %c0_16] : memref<80x128xf32, #tpu.memory_space<vmem>>, vector<80x128xf32>
      %c0_17 = arith.constant 0 : index
      %c0_18 = arith.constant 0 : index
      %39 = vector.load %arg10[%c0_17, %c0_18] : memref<80x128xf32, #tpu.memory_space<vmem>>, vector<80x128xf32>
      %40 = vector.extract_strided_slice %39 {offsets = [8, 0], sizes = [64, 128], strides = [1, 1]} : vector<80x128xf32> to vector<64x128xf32>
      %41 = vector.extract_strided_slice %39 {offsets = [7, 0], sizes = [64, 128], strides = [1, 1]} : vector<80x128xf32> to vector<64x128xf32>
      %42 = vector.extract_strided_slice %39 {offsets = [9, 0], sizes = [64, 128], strides = [1, 1]} : vector<80x128xf32> to vector<64x128xf32>
      %cst = arith.constant dense<0.000000e+00> : vector<64x128xf32>
      %43 = tpu.matmul %40, %8, %cst {dimension_numbers = #tpu.dot_dimension_numbers<[1], [0], [0], [1], [0, 0, 1, 1], [], []>} : vector<64x128xf32>, vector<128x128xf32>, vector<64x128xf32> -> vector<64x128xf32>
      %cst_19 = arith.constant 2.000000e+00 : f32
      %44 = vector.broadcast %cst_19 : f32 to vector<64x128xf32>
      %45 = arith.mulf %44, %40 : vector<64x128xf32>
      %46 = arith.subf %42, %45 : vector<64x128xf32>
      %47 = arith.addf %46, %41 : vector<64x128xf32>
      %cst_20 = arith.constant 0.00999999977 : f32
      %48 = vector.broadcast %cst_20 : f32 to vector<64x128xf32>
      %49 = arith.mulf %47, %48 : vector<64x128xf32>
      %cst_21 = arith.constant 2.000000e+00 : f32
      %50 = vector.broadcast %cst_21 : f32 to vector<64x128xf32>
      %51 = arith.mulf %50, %40 : vector<64x128xf32>
      %52 = vector.extract_strided_slice %38 {offsets = [8, 0], sizes = [64, 128], strides = [1, 1]} : vector<80x128xf32> to vector<64x128xf32>
      %53 = arith.subf %51, %52 : vector<64x128xf32>
      %54 = arith.addf %43, %49 : vector<64x128xf32>
      %55 = arith.mulf %7, %54 : vector<64x128xf32>
      %56 = arith.addf %53, %55 : vector<64x128xf32>
      %57 = vector.broadcast %17 : vector<1x128xf32> to vector<64x128xf32>
      %58 = arith.mulf %57, %56 : vector<64x128xf32>
      %59 = vector.broadcast %6 : f32 to vector<64x128xf32>
      %60 = arith.mulf %59, %9 : vector<64x128xf32>
      %61 = arith.addf %58, %60 : vector<64x128xf32>
      %62 = vector.broadcast %21 : vector<1x128xf32> to vector<64x128xf32>
      %63 = arith.mulf %61, %62 : vector<64x128xf32>
      %cst_22 = arith.constant dense<0.000000e+00> : vector<64xf32>
      %64 = vector.multi_reduction <add>, %63, %cst_22 [1] : vector<64x128xf32> to vector<64xf32>
      %65 = vector.shape_cast %64 : vector<64xf32> to vector<64x1xf32>
      %c0_23 = arith.constant 0 : index
      %c0_24 = arith.constant 0 : index
      %66 = vector.load %arg9[%c0_23, %c0_24] : memref<64x1xf32, #tpu.memory_space<vmem>>, vector<64x1xf32>
      tpu.vector_store %arg9[%c0_23, %c0_24], %65 {strides = array<i32>} : memref<64x1xf32, #tpu.memory_space<vmem>>, vector<64x1xf32>,
      %cst_25 = arith.constant 0.000000e+00 : f32
      %67 = vector.broadcast %cst_25 : f32 to vector<8x128xf32>
      %c0_26 = arith.constant 0 : index
      %c0_27 = arith.constant 0 : index
      %68 = vector.load %arg11[%c0_26, %c0_27] : memref<80x128xf32, #tpu.memory_space<vmem>>, vector<8x128xf32>
      tpu.vector_store %arg11[%c0_26, %c0_27], %67 {strides = array<i32>} : memref<80x128xf32, #tpu.memory_space<vmem>>, vector<8x128xf32>,
      %c8 = arith.constant 8 : index
      %c0_28 = arith.constant 0 : index
      %69 = vector.load %arg11[%c8, %c0_28] : memref<80x128xf32, #tpu.memory_space<vmem>>, vector<64x128xf32>
      tpu.vector_store %arg11[%c8, %c0_28], %61 {strides = array<i32>} : memref<80x128xf32, #tpu.memory_space<vmem>>, vector<64x128xf32>,
      %c72 = arith.constant 72 : index
      %c0_29 = arith.constant 0 : index
      %70 = vector.load %arg11[%c72, %c0_29] : memref<80x128xf32, #tpu.memory_space<vmem>>, vector<8x128xf32>
      tpu.vector_store %arg11[%c72, %c0_29], %67 {strides = array<i32>} : memref<80x128xf32, #tpu.memory_space<vmem>>, vector<8x128xf32>,
      %c0_i32_30 = arith.constant 0 : i32
      %71 = arith.cmpi eq, %arg0, %c0_i32_30 : i32
      %72 = arith.extui %71 : i1 to i32
      %c0_i32_31 = arith.constant 0 : i32
      %73 = arith.cmpi ne, %72, %c0_i32_31 : i32
      scf.if %73 {
        %c0_32 = arith.constant 0 : index
        %c0_33 = arith.constant 0 : index
        %74 = vector.load %arg8[%c0_32, %c0_33] : memref<80x128xf32, #tpu.memory_space<vmem>>, vector<8x128xf32>
        tpu.vector_store %arg8[%c0_32, %c0_33], %67 {strides = array<i32>} : memref<80x128xf32, #tpu.memory_space<vmem>>, vector<8x128xf32>,
        %c8_34 = arith.constant 8 : index
        %c0_35 = arith.constant 0 : index
        %75 = vector.load %arg8[%c8_34, %c0_35] : memref<80x128xf32, #tpu.memory_space<vmem>>, vector<64x128xf32>
        tpu.vector_store %arg8[%c8_34, %c0_35], %61 {strides = array<i32>} : memref<80x128xf32, #tpu.memory_space<vmem>>, vector<64x128xf32>,
        %c72_36 = arith.constant 72 : index
        %c0_37 = arith.constant 0 : index
        %76 = vector.load %arg8[%c72_36, %c0_37] : memref<80x128xf32, #tpu.memory_space<vmem>>, vector<8x128xf32>
        tpu.vector_store %arg8[%c72_36, %c0_37], %67 {strides = array<i32>} : memref<80x128xf32, #tpu.memory_space<vmem>>, vector<8x128xf32>,
      } else {
      }
    } else {
    }
    return
  }
  func.func @transform_0(%arg0: i32, %arg1: memref<1xi32, #tpu.memory_space<smem>>, %arg2: memref<500xf32, #tpu.memory_space<smem>>) -> (i32, i32) {
    %c0_i32 = arith.constant 0 : i32
    %c0_i32_0 = arith.constant 0 : i32
    %c0_i32_1 = arith.constant 0 : i32
    return %c0_i32, %c0_i32_0 : i32, i32
  }
  func.func @transform_1(%arg0: i32, %arg1: memref<1xi32, #tpu.memory_space<smem>>, %arg2: memref<500xf32, #tpu.memory_space<smem>>) -> (i32, i32) {
    %c0_i32 = arith.constant 0 : i32
    %c0_i32_0 = arith.constant 0 : i32
    %c0_i32_1 = arith.constant 0 : i32
    return %c0_i32, %c0_i32_0 : i32, i32
  }
  func.func @transform_2(%arg0: i32, %arg1: memref<1xi32, #tpu.memory_space<smem>>, %arg2: memref<500xf32, #tpu.memory_space<smem>>) -> (i32, i32) {
    %c0_i32 = arith.constant 0 : i32
    %c0_i32_0 = arith.constant 0 : i32
    %c0_i32_1 = arith.constant 0 : i32
    return %c0_i32, %c0_i32_0 : i32, i32
  }
  func.func @transform_3(%arg0: i32, %arg1: memref<1xi32, #tpu.memory_space<smem>>, %arg2: memref<500xf32, #tpu.memory_space<smem>>) -> (i32, i32) {
    %c0_i32 = arith.constant 0 : i32
    %c0_i32_0 = arith.constant 0 : i32
    %c0_i32_1 = arith.constant 0 : i32
    return %c0_i32, %c0_i32_0 : i32, i32
  }
  func.func @transform_4(%arg0: i32, %arg1: memref<1xi32, #tpu.memory_space<smem>>, %arg2: memref<500xf32, #tpu.memory_space<smem>>) -> (i32, i32) {
    %c0_i32 = arith.constant 0 : i32
    %c0_i32_0 = arith.constant 0 : i32
    %c0_i32_1 = arith.constant 0 : i32
    return %c0_i32, %c0_i32_0 : i32, i32
  }
  func.func @transform_5(%arg0: i32, %arg1: memref<1xi32, #tpu.memory_space<smem>>, %arg2: memref<500xf32, #tpu.memory_space<smem>>) -> (i32, i32) {
    %c0_i32 = arith.constant 0 : i32
    %c0_i32_0 = arith.constant 0 : i32
    %c0_i32_1 = arith.constant 0 : i32
    return %c0_i32, %c0_i32_0 : i32, i32
  }
  func.func @transform_6(%arg0: i32, %arg1: memref<1xi32, #tpu.memory_space<smem>>, %arg2: memref<500xf32, #tpu.memory_space<smem>>) -> (i32, i32) {
    %c0_i32 = arith.constant 0 : i32
    %c0_i32_0 = arith.constant 0 : i32
    return %arg0, %c0_i32 : i32, i32
  }
}

</mosaic_0001>

<llo_original>
// kernel: tpu_custom_call.1
$region0: #{tpu_custom_call.1}
  #allocation0 [shape = 'u32[]', space=smem, size = 0x4, offset = 0x4, fixed_abs, tag = 'smem constant byte address 0x4 - core index']
  #allocation1 [shape = 'u32[144,128]{1,0:T(1,128)}', space=vmem, size = 0x12000, scoped, tag = 'internal scratch']
  #allocation2 [shape = 'f32[80,128]{1,0:T(8,128)}', space=vmem, size = 0xa000, scoped, tag = 'scratch operand']
  #allocation3 [shape = 'f32[80,128]{1,0:T(8,128)}', space=vmem, size = 0xa000, scoped, tag = 'scratch operand']
  #allocation4 [shape = 's32[1]{0}', space=sflag, size = 0x4, scoped, tag = 'scoped memory for tpu_custom_call.1']
  #allocation5 [shape = 's32[1]{0:T(128)S(6)}', space=smem, size = 0x200, scoped, tag = 'prefetched SMEM operand 0']
  #allocation6 [shape = 'u8[2048]{0}', space=smem, size = 0x800, scoped, tag = 'prefetched SMEM operand 1']
  %s0 = inlined_call_operand.<no memory space> [shape: s32[1], index: 0, kind: input, shape index: {}]
  %s1 = inlined_call_operand.hbm [shape: f32[500], index: 1, kind: input, shape index: {}]
  %s2 = inlined_call_operand.hbm [shape: f32[80,128], index: 2, kind: input, shape index: {}]
  %s3 = inlined_call_operand.hbm [shape: f32[80,128], index: 3, kind: input, shape index: {}]
  %s4 = inlined_call_operand.hbm [shape: f32[64,128], index: 4, kind: input, shape index: {}]
  %s5 = inlined_call_operand.hbm [shape: f32[128,128], index: 5, kind: input, shape index: {}]
  %s6 = inlined_call_operand.hbm [shape: f32[64,128], index: 6, kind: input, shape index: {}]
  %s7 = inlined_call_operand.hbm [shape: f32[80,128], index: 7, kind: output, shape index: {0}]
  %s8 = inlined_call_operand.vmem [shape: f32[64,1], index: 8, kind: output, shape index: {1}]
  %9 = xla_tuple %s7, %s8
  %s10 = sld [smem:[#allocation0]]
  $region78: #{tpu_custom_call.1} parent=0
    _
  %s12 = ssub.s32 1, %s10
  %s13 = scalar_select 0, %s12, %s10
  %14 = sst [smem:[#allocation5]] %s0
  %16 = dma.hbm_to_smem %s1, 64, [#allocation6], [#allocation4]
  %17 = dma.done [#allocation4], 64
  %18 = sfence
  $region1: #{tpu_custom_call.1} parent=0
    #allocation7 [shape = 'u8[40960]{0}', space=vmem, size = 0xa000, scoped, tag = 'input window, operand 2, single buffered']
    #allocation8 [shape = 's32[1]{0}', space=sflag, size = 0x4, scoped, tag = 'scoped memory for tpu_custom_call.1']
    #allocation9 [shape = 's32[1]{0}', space=sflag, size = 0x4, scoped, tag = 'scoped memory for tpu_custom_call.1']
    #allocation10 [shape = 'u8[40960]{0}', space=vmem, size = 0xa000, scoped, tag = 'input window, operand 3, single buffered']
    #allocation11 [shape = 's32[1]{0}', space=sflag, size = 0x4, scoped, tag = 'scoped memory for tpu_custom_call.1']
    #allocation12 [shape = 'u8[32768]{0}', space=vmem, size = 0x8000, scoped, tag = 'input window, operand 4, single buffered']
    #allocation13 [shape = 'u8[65536]{0}', space=vmem, size = 0x10000, scoped, tag = 'input window, operand 5, single buffered']
    #allocation14 [shape = 's32[1]{0}', space=sflag, size = 0x4, scoped, tag = 'scoped memory for tpu_custom_call.1']
    #allocation15 [shape = 'u8[32768]{0}', space=vmem, size = 0x8000, scoped, tag = 'input window, operand 6, single buffered']
    #allocation16 [shape = 'u8[40960]{0}', space=vmem, size = 0xa000, scoped, tag = 'output window, operand 0, single buffered']
    %19 = vsyncpa [#allocation8], 0
    %20 = vsyncpa [#allocation11], 0
    %21 = vsyncpa [#allocation14], 0
    %22 = vsyncpa [#allocation9], 0
    // Predicated region
    $region2: #{tpu_custom_call.1} parent=1 // pred_check
      _
    $region3: #{tpu_custom_call.1} parent=1 // pred_check_branch
      %24 = sbr.rel (0) target = $region5
    $region4: #{tpu_custom_call.1} parent=1 // pred_region
      %s26 = ssub.s32 1280, 1280
      %27 = vsyncadd [#allocation8], %s26
      %s28 = sshll.u32 [#allocation7], 4
      %s29 = int_to_ptr.vmem [resolvable:$true] %s28
      %34 = dma.hbm_to_vmem [thread:$0]  %s2, 1280, %s29, [#allocation8], 128, 128, 8
    $region5: #{tpu_custom_call.1} parent=1 // pred_fallthru
      _
    // Predicated region
    $region6: #{tpu_custom_call.1} parent=1 // pred_check
      _
    $region7: #{tpu_custom_call.1} parent=1 // pred_check_branch
      %36 = sbr.rel (0) target = $region9
    $region8: #{tpu_custom_call.1} parent=1 // pred_region
      %s38 = ssub.s32 1280, 1280
      %39 = vsyncadd [#allocation11], %s38
      %s40 = sshll.u32 [#allocation10], 4
      %s41 = int_to_ptr.vmem [resolvable:$true] %s40
      %46 = dma.hbm_to_vmem [thread:$0]  %s3, 1280, %s41, [#allocation11], 128, 128, 8
    $region9: #{tpu_custom_call.1} parent=1 // pred_fallthru
      _
    // Predicated region
    $region10: #{tpu_custom_call.1} parent=1 // pred_check
      _
    $region11: #{tpu_custom_call.1} parent=1 // pred_check_branch
      %48 = sbr.rel (0) target = $region13
    $region12: #{tpu_custom_call.1} parent=1 // pred_region
      %s50 = ssub.s32 1024, 1024
      %51 = vsyncadd [#allocation11], %s50
      %s52 = sshll.u32 [#allocation12], 4
      %s53 = int_to_ptr.vmem [resolvable:$true] %s52
      %58 = dma.hbm_to_vmem [thread:$0]  %s4, 1024, %s53, [#allocation11], 128, 128, 8
    $region13: #{tpu_custom_call.1} parent=1 // pred_fallthru
      _
    // Predicated region
    $region14: #{tpu_custom_call.1} parent=1 // pred_check
      _
    $region15: #{tpu_custom_call.1} parent=1 // pred_check_branch
      %60 = sbr.rel (0) target = $region17
    $region16: #{tpu_custom_call.1} parent=1 // pred_region
      %s62 = ssub.s32 2048, 2048
      %63 = vsyncadd [#allocation14], %s62
      %s64 = sshll.u32 [#allocation13], 4
      %s65 = int_to_ptr.vmem [resolvable:$true] %s64
      %70 = dma.hbm_to_vmem [thread:$0]  %s5, 2048, %s65, [#allocation14], 128, 128, 8
    $region17: #{tpu_custom_call.1} parent=1 // pred_fallthru
      _
    // Predicated region
    $region18: #{tpu_custom_call.1} parent=1 // pred_check
      _
    $region19: #{tpu_custom_call.1} parent=1 // pred_check_branch
      %72 = sbr.rel (0) target = $region21
    $region20: #{tpu_custom_call.1} parent=1 // pred_region
      %s74 = ssub.s32 1024, 1024
      %75 = vsyncadd [#allocation14], %s74
      %s76 = sshll.u32 [#allocation15], 4
      %s77 = int_to_ptr.vmem [resolvable:$true] %s76
      %82 = dma.hbm_to_vmem [thread:$0]  %s6, 1024, %s77, [#allocation14], 128, 128, 8
    $region21: #{tpu_custom_call.1} parent=1 // pred_fallthru
      _
    // Predicated region
    $region22: #{tpu_custom_call.1} parent=1 // pred_check
      _
    $region23: #{tpu_custom_call.1} parent=1 // pred_check_branch
      %84 = sbr.rel (0) target = $region25
    $region24: #{tpu_custom_call.1} parent=1 // pred_region
      %85 = dma.done [#allocation8], 1280
    $region25: #{tpu_custom_call.1} parent=1 // pred_fallthru
      _
    // Predicated region
    $region26: #{tpu_custom_call.1} parent=1 // pred_check
      _
    $region27: #{tpu_custom_call.1} parent=1 // pred_check_branch
      %87 = sbr.rel (0) target = $region29
    $region28: #{tpu_custom_call.1} parent=1 // pred_region
      %88 = dma.done [#allocation11], 1280
    $region29: #{tpu_custom_call.1} parent=1 // pred_fallthru
      _
    // Predicated region
    $region30: #{tpu_custom_call.1} parent=1 // pred_check
      _
    $region31: #{tpu_custom_call.1} parent=1 // pred_check_branch
      %90 = sbr.rel (0) target = $region33
    $region32: #{tpu_custom_call.1} parent=1 // pred_region
      %91 = dma.done [#allocation11], 1024
    $region33: #{tpu_custom_call.1} parent=1 // pred_fallthru
      _
    // Predicated region
    $region34: #{tpu_custom_call.1} parent=1 // pred_check
      _
    $region35: #{tpu_custom_call.1} parent=1 // pred_check_branch
      %93 = sbr.rel (0) target = $region37
    $region36: #{tpu_custom_call.1} parent=1 // pred_region
      %94 = dma.done [#allocation14], 2048
    $region37: #{tpu_custom_call.1} parent=1 // pred_fallthru
      _
    // Predicated region
    $region38: #{tpu_custom_call.1} parent=1 // pred_check
      _
    $region39: #{tpu_custom_call.1} parent=1 // pred_check_branch
      %96 = sbr.rel (0) target = $region41
    $region40: #{tpu_custom_call.1} parent=1 // pred_region
      %97 = dma.done [#allocation14], 1024
    $region41: #{tpu_custom_call.1} parent=1 // pred_fallthru
      _
    %p98 = scmp.eq.s32.totalorder 0, 0
    // Predicated region
    $region42: #{tpu_custom_call.1} parent=1 // pred_check
      %p99 = pneg %p98
    $region43: #{tpu_custom_call.1} parent=1 // pred_check_branch
      %101 = sbr.rel (%p99) target = $region45
    $region44: #{tpu_custom_call.1} parent=1 // pred_region
      %v102 = vld [vmem:[#allocation7] sm:$0xff]
      %v103 = vld [vmem:[#allocation7 + $0x8] sm:$0xff]
      %v104 = vld [vmem:[#allocation7 + $0x10] sm:$0xff]
      %v105 = vld [vmem:[#allocation7 + $0x18] sm:$0xff]
      %v106 = vld [vmem:[#allocation7 + $0x20] sm:$0xff]
      %v107 = vld [vmem:[#allocation7 + $0x28] sm:$0xff]
      %v108 = vld [vmem:[#allocation7 + $0x30] sm:$0xff]
      %v109 = vld [vmem:[#allocation7 + $0x38] sm:$0xff]
      %v110 = vld [vmem:[#allocation7 + $0x40] sm:$0xff]
      %v111 = vld [vmem:[#allocation7 + $0x48] sm:$0xff]
      %112 = vst [vmem:[#allocation2] sm:$0xff] %v102
      %113 = vst [vmem:[#allocation2 + $0x8] sm:$0xff] %v103
      %114 = vst [vmem:[#allocation2 + $0x10] sm:$0xff] %v104
      %115 = vst [vmem:[#allocation2 + $0x18] sm:$0xff] %v105
      %116 = vst [vmem:[#allocation2 + $0x20] sm:$0xff] %v106
      %117 = vst [vmem:[#allocation2 + $0x28] sm:$0xff] %v107
      %118 = vst [vmem:[#allocation2 + $0x30] sm:$0xff] %v108
      %119 = vst [vmem:[#allocation2 + $0x38] sm:$0xff] %v109
      %120 = vst [vmem:[#allocation2 + $0x40] sm:$0xff] %v110
      %121 = vst [vmem:[#allocation2 + $0x48] sm:$0xff] %v111
      %v122 = vld [vmem:[#allocation10] sm:$0xff]
      %v123 = vld [vmem:[#allocation10 + $0x8] sm:$0xff]
      %v124 = vld [vmem:[#allocation10 + $0x10] sm:$0xff]
      %v125 = vld [vmem:[#allocation10 + $0x18] sm:$0xff]
      %v126 = vld [vmem:[#allocation10 + $0x20] sm:$0xff]
      %v127 = vld [vmem:[#allocation10 + $0x28] sm:$0xff]
      %v128 = vld [vmem:[#allocation10 + $0x30] sm:$0xff]
      %v129 = vld [vmem:[#allocation10 + $0x38] sm:$0xff]
      %v130 = vld [vmem:[#allocation10 + $0x40] sm:$0xff]
      %v131 = vld [vmem:[#allocation10 + $0x48] sm:$0xff]
      %132 = vst [vmem:[#allocation3] sm:$0xff] %v122
      %133 = vst [vmem:[#allocation3 + $0x8] sm:$0xff] %v123
      %134 = vst [vmem:[#allocation3 + $0x10] sm:$0xff] %v124
      %135 = vst [vmem:[#allocation3 + $0x18] sm:$0xff] %v125
      %136 = vst [vmem:[#allocation3 + $0x20] sm:$0xff] %v126
      %137 = vst [vmem:[#allocation3 + $0x28] sm:$0xff] %v127
      %138 = vst [vmem:[#allocation3 + $0x30] sm:$0xff] %v128
      %139 = vst [vmem:[#allocation3 + $0x38] sm:$0xff] %v129
      %140 = vst [vmem:[#allocation3 + $0x40] sm:$0xff] %v130
      %141 = vst [vmem:[#allocation3 + $0x48] sm:$0xff] %v131
    $region45: #{tpu_custom_call.1} parent=1 // pred_fallthru
      _
    %s142 = sld [smem:[#allocation5]]
    %s143 = sadd.s32 %s142, 0
    %s144 = sld [smem:[#allocation6 + %s143]]
    %v145 = vld [vmem:[#allocation12] sm:$0xff]
    %v146 = vld [vmem:[#allocation12 + $0x8] sm:$0xff]
    %v147 = vld [vmem:[#allocation12 + $0x10] sm:$0xff]
    %v148 = vld [vmem:[#allocation12 + $0x18] sm:$0xff]
    %v149 = vld [vmem:[#allocation12 + $0x20] sm:$0xff]
    %v150 = vld [vmem:[#allocation12 + $0x28] sm:$0xff]
    %v151 = vld [vmem:[#allocation12 + $0x30] sm:$0xff]
    %v152 = vld [vmem:[#allocation12 + $0x38] sm:$0xff]
    %v153 = vld [vmem:[#allocation13] sm:$0xff]
    %v154 = vld [vmem:[#allocation13 + $0x8] sm:$0xff]
    %v155 = vld [vmem:[#allocation13 + $0x10] sm:$0xff]
    %v156 = vld [vmem:[#allocation13 + $0x18] sm:$0xff]
    %v157 = vld [vmem:[#allocation13 + $0x20] sm:$0xff]
    %v158 = vld [vmem:[#allocation13 + $0x28] sm:$0xff]
    %v159 = vld [vmem:[#allocation13 + $0x30] sm:$0xff]
    %v160 = vld [vmem:[#allocation13 + $0x38] sm:$0xff]
    %v161 = vld [vmem:[#allocation13 + $0x40] sm:$0xff]
    %v162 = vld [vmem:[#allocation13 + $0x48] sm:$0xff]
    %v163 = vld [vmem:[#allocation13 + $0x50] sm:$0xff]
    %v164 = vld [vmem:[#allocation13 + $0x58] sm:$0xff]
    %v165 = vld [vmem:[#allocation13 + $0x60] sm:$0xff]
    %v166 = vld [vmem:[#allocation13 + $0x68] sm:$0xff]
    %v167 = vld [vmem:[#allocation13 + $0x70] sm:$0xff]
    %v168 = vld [vmem:[#allocation13 + $0x78] sm:$0xff]
    %v169 = vld [vmem:[#allocation15] sm:$0xff]
    %v170 = vld [vmem:[#allocation15 + $0x8] sm:$0xff]
    %v171 = vld [vmem:[#allocation15 + $0x10] sm:$0xff]
    %v172 = vld [vmem:[#allocation15 + $0x18] sm:$0xff]
    %v173 = vld [vmem:[#allocation15 + $0x20] sm:$0xff]
    %v174 = vld [vmem:[#allocation15 + $0x28] sm:$0xff]
    %v175 = vld [vmem:[#allocation15 + $0x30] sm:$0xff]
    %v176 = vld [vmem:[#allocation15 + $0x38] sm:$0xff]
    %v177 = vlaneseq
    %v178 = vand.u32 %v177, 127
    %vm179 = vcmp.ge.s32.totalorder %v178, 8
    %vm180 = vcmp.lt.s32.totalorder %v178, 72
    %vm181 = vmand %vm179, %vm180
    %v182 = vsel %vm181, 1, 0
    %v183 = vcvt.s32.f32 %v182
    %vm184 = vcmp.eq.s32.totalorder %v178, 58
    %v185 = vsel %vm184, 1, 0
    %v186 = vcvt.s32.f32 %v185
    %s187 = ssub.s32 0, 0
    %s188 = ssub.s32 0, 0
    %p189 = scmp.ne.s32.totalorder 0, 0
    %p190 = scmp.lt.s32.totalorder 0, 0
    %p191 = pnand %p190, %p189
    %p192 = pneg %p191
    %s193 = sadd.s32 0, 2
    %s194 = scalar_select %p192, %s193, 0
    %p195 = scmp.eq.s32.totalorder %s194, 0
    // Predicated region
    $region46: #{tpu_custom_call.1} parent=1 // pred_check
      %p196 = pneg %p195
    $region47: #{tpu_custom_call.1} parent=1 // pred_check_branch
      %198 = sbr.rel (%p196) target = $region49
    $region48: #{tpu_custom_call.1} parent=1 // pred_region
      %v199 = vld [vmem:[#allocation2 + $0x8] sm:$0xff]
      %v200 = vld [vmem:[#allocation2 + $0x10] sm:$0xff]
      %v201 = vld [vmem:[#allocation2 + $0x18] sm:$0xff]
      %v202 = vld [vmem:[#allocation2 + $0x20] sm:$0xff]
      %v203 = vld [vmem:[#allocation2 + $0x28] sm:$0xff]
      %v204 = vld [vmem:[#allocation2 + $0x30] sm:$0xff]
      %v205 = vld [vmem:[#allocation2 + $0x38] sm:$0xff]
      %v206 = vld [vmem:[#allocation2 + $0x40] sm:$0xff]
      %v207 = vld [vmem:[#allocation3] sm:$0xff]
      %v208 = vld [vmem:[#allocation3 + $0x8] sm:$0xff]
      %v209 = vld [vmem:[#allocation3 + $0x10] sm:$0xff]
      %v210 = vld [vmem:[#allocation3 + $0x18] sm:$0xff]
      %v211 = vld [vmem:[#allocation3 + $0x20] sm:$0xff]
      %v212 = vld [vmem:[#allocation3 + $0x28] sm:$0xff]
      %v213 = vld [vmem:[#allocation3 + $0x30] sm:$0xff]
      %v214 = vld [vmem:[#allocation3 + $0x38] sm:$0xff]
      %v215 = vld [vmem:[#allocation3 + $0x40] sm:$0xff]
      %v216 = vld [vmem:[#allocation3 + $0x48] sm:$0xff]
      %v217 = vmul.f32 %v208, 2.0
      %v218 = vmul.f32 %v209, 2.0
      %v219 = vmul.f32 %v210, 2.0
      %v220 = vmul.f32 %v211, 2.0
      %v221 = vmul.f32 %v212, 2.0
      %v222 = vmul.f32 %v213, 2.0
      %v223 = vmul.f32 %v214, 2.0
      %v224 = vmul.f32 %v215, 2.0
      %vm233 = vcmask 1040384
      %v234 = vrot.slane %v217, 7
      %v235 = vrot.slane %v218, 7
      %v236 = vsel %vm233, %v234, %v235
      %v237 = vrot.slane %v219, 7
      %v238 = vsel %vm233, %v235, %v237
      %v239 = vrot.slane %v220, 7
      %v240 = vsel %vm233, %v237, %v239
      %v241 = vrot.slane %v221, 7
      %v242 = vsel %vm233, %v239, %v241
      %v243 = vrot.slane %v222, 7
      %v244 = vsel %vm233, %v241, %v243
      %v245 = vrot.slane %v223, 7
      %v246 = vsel %vm233, %v243, %v245
      %v247 = vrot.slane %v224, 7
      %v248 = vsel %vm233, %v245, %v247
      %v258 = vsub.f32 %v208, %v234
      %v259 = vsub.f32 %v209, %v236
      %v260 = vsub.f32 %v210, %v238
      %v261 = vsub.f32 %v211, %v240
      %v262 = vsub.f32 %v212, %v242
      %v263 = vsub.f32 %v213, %v244
      %v264 = vsub.f32 %v214, %v246
      %v265 = vsub.f32 %v215, %v248
      %v266 = vsub.f32 %v216, %v247
      %vm276 = vcmask 1041408
      %v277 = vrot.slane %v207, 6
      %v278 = vrot.slane %v208, 6
      %v279 = vsel %vm276, %v277, %v278
      %v280 = vrot.slane %v209, 6
      %v281 = vsel %vm276, %v278, %v280
      %v282 = vrot.slane %v210, 6
      %v283 = vsel %vm276, %v280, %v282
      %v284 = vrot.slane %v211, 6
      %v285 = vsel %vm276, %v282, %v284
      %v286 = vrot.slane %v212, 6
      %v287 = vsel %vm276, %v284, %v286
      %v288 = vrot.slane %v213, 6
      %v289 = vsel %vm276, %v286, %v288
      %v290 = vrot.slane %v214, 6
      %v291 = vsel %vm276, %v288, %v290
      %v292 = vrot.slane %v215, 6
      %v293 = vsel %vm276, %v290, %v292
      %v303 = vadd.f32 %v258, %v279
      %v304 = vadd.f32 %v259, %v281
      %v305 = vadd.f32 %v260, %v283
      %v306 = vadd.f32 %v261, %v285
      %v307 = vadd.f32 %v262, %v287
      %v308 = vadd.f32 %v263, %v289
      %v309 = vadd.f32 %v264, %v291
      %v310 = vadd.f32 %v265, %v293
      %v311 = vadd.f32 %v266, %v292
      %v312 = vmul.f32 %v303, 0.01
      %v313 = vmul.f32 %v304, 0.01
      %v314 = vmul.f32 %v305, 0.01
      %v315 = vmul.f32 %v306, 0.01
      %v316 = vmul.f32 %v307, 0.01
      %v317 = vmul.f32 %v308, 0.01
      %v318 = vmul.f32 %v309, 0.01
      %v319 = vmul.f32 %v310, 0.01
      %v320 = vmul.f32 %v311, 0.01
      %v321 = vsub.f32 %v217, %v199
      %v322 = vsub.f32 %v218, %v200
      %v323 = vsub.f32 %v219, %v201
      %v324 = vsub.f32 %v220, %v202
      %v325 = vsub.f32 %v221, %v203
      %v326 = vsub.f32 %v222, %v204
      %v327 = vsub.f32 %v223, %v205
      %v328 = vsub.f32 %v224, %v206
      %vm338 = vcmask 1046528
      %v339 = vrot.slane %v312, 1
      %v340 = vrot.slane %v313, 1
      %v341 = vsel %vm338, %v339, %v340
      %v342 = vrot.slane %v314, 1
      %v343 = vsel %vm338, %v340, %v342
      %v344 = vrot.slane %v315, 1
      %v345 = vsel %vm338, %v342, %v344
      %v346 = vrot.slane %v316, 1
      %v347 = vsel %vm338, %v344, %v346
      %v348 = vrot.slane %v317, 1
      %v349 = vsel %vm338, %v346, %v348
      %v350 = vrot.slane %v318, 1
      %v351 = vsel %vm338, %v348, %v350
      %v352 = vrot.slane %v319, 1
      %v353 = vsel %vm338, %v350, %v352
      %v354 = vrot.slane %v320, 1
      %v355 = vsel %vm338, %v352, %v354
      %364 = vmatprep.subr.mxu0 0.0
      %365 = vmatpush1.msra.mxu0 %v153
      %366 = vmatprep.subr.mxu0 0.0
      %367 = vmatpush1.msra.mxu0 %v154
      %368 = vmatprep.subr.mxu0 0.0
      %369 = vmatpush1.msra.mxu0 %v155
      %370 = vmatprep.subr.mxu0 0.0
      %371 = vmatpush1.msra.mxu0 %v156
      %372 = vmatprep.subr.mxu0 0.0
      %373 = vmatpush1.msra.mxu0 %v157
      %374 = vmatprep.subr.mxu0 0.0
      %375 = vmatpush1.msra.mxu0 %v158
      %376 = vmatprep.subr.mxu0 0.0
      %377 = vmatpush1.msra.mxu0 %v159
      %378 = vmatprep.subr.mxu0 0.0
      %379 = vmatpush1.msra.mxu0 %v160
      %380 = vmatprep.subr.mxu0 0.0
      %381 = vmatpush1.msra.mxu0 %v161
      %382 = vmatprep.subr.mxu0 0.0
      %383 = vmatpush1.msra.mxu0 %v162
      %384 = vmatprep.subr.mxu0 0.0
      %385 = vmatpush1.msra.mxu0 %v163
      %386 = vmatprep.subr.mxu0 0.0
      %387 = vmatpush1.msra.mxu0 %v164
      %388 = vmatprep.subr.mxu0 0.0
      %389 = vmatpush1.msra.mxu0 %v165
      %390 = vmatprep.subr.mxu0 0.0
      %391 = vmatpush1.msra.mxu0 %v166
      %392 = vmatprep.subr.mxu0 0.0
      %393 = vmatpush1.msra.mxu0 %v167
      %394 = vmatprep.subr.mxu0 0.0
      %395 = vmatpush1.msra.mxu0 %v168
      %396 = vmatprep.subr.mxu0 0.0
      %397 = vmatpush1.msra.mxu0 0.0
      %398 = vmatprep.subr.mxu0 0.0
      %399 = vmatpush1.msra.mxu0 0.0
      %400 = vmatprep.subr.mxu0 0.0
      %401 = vmatpush1.msra.mxu0 0.0
      %402 = vmatprep.subr.mxu0 0.0
      %403 = vmatpush1.msra.mxu0 0.0
      %404 = vmatprep.subr.mxu0 0.0
      %405 = vmatpush1.msra.mxu0 0.0
      %406 = vmatprep.subr.mxu0 0.0
      %407 = vmatpush1.msra.mxu0 0.0
      %408 = vmatprep.subr.mxu0 0.0
      %409 = vmatpush1.msra.mxu0 0.0
      %410 = vmatprep.subr.mxu0 0.0
      %411 = vmatpush1.msra.mxu0 0.0
      %412 = vmatprep.subr.mxu0 0.0
      %413 = vmatpush1.msra.mxu0 0.0
      %414 = vmatprep.subr.mxu0 0.0
      %415 = vmatpush1.msra.mxu0 0.0
      %416 = vmatprep.subr.mxu0 0.0
      %417 = vmatpush1.msra.mxu0 0.0
      %418 = vmatprep.subr.mxu0 0.0
      %419 = vmatpush1.msra.mxu0 0.0
      %420 = vmatprep.subr.mxu0 0.0
      %421 = vmatpush1.msra.mxu0 0.0
      %422 = vmatprep.subr.mxu0 0.0
      %423 = vmatpush1.msra.mxu0 0.0
      %424 = vmatprep.subr.mxu0 0.0
      %425 = vmatpush1.msra.mxu0 0.0
      %426 = vmatprep.subr.mxu0 0.0
      %427 = vmatpush1.msra.mxu0 0.0
      %428 = vmatprep.mubr.f32.mxu0 0.0
      %429 = vmatmul.mubr.f32.gmra.mrb[0].mxu0 %v208
      %v430 = vpop.f32.mrb[0].mxu0
      %v431 = vadd.f32 %v341, %v430
      %v432 = vpop.f32.mrb[0].mxu0
      %433 = vmatprep.mubr.f32.mxu0 0.0
      %434 = vmatmul.mubr.f32.gmra.mrb[0].mxu0 %v209
      %v435 = vpop.f32.mrb[0].mxu0
      %v436 = vadd.f32 %v343, %v435
      %v437 = vpop.f32.mrb[0].mxu0
      %438 = vmatprep.mubr.f32.mxu0 0.0
      %439 = vmatmul.mubr.f32.gmra.mrb[0].mxu0 %v210
      %v440 = vpop.f32.mrb[0].mxu0
      %v441 = vadd.f32 %v345, %v440
      %v442 = vpop.f32.mrb[0].mxu0
      %443 = vmatprep.mubr.f32.mxu0 0.0
      %444 = vmatmul.mubr.f32.gmra.mrb[0].mxu0 %v211
      %v445 = vpop.f32.mrb[0].mxu0
      %v446 = vadd.f32 %v347, %v445
      %v447 = vpop.f32.mrb[0].mxu0
      %448 = vmatprep.mubr.f32.mxu0 0.0
      %449 = vmatmul.mubr.f32.gmra.mrb[0].mxu0 %v212
      %v450 = vpop.f32.mrb[0].mxu0
      %v451 = vadd.f32 %v349, %v450
      %v452 = vpop.f32.mrb[0].mxu0
      %453 = vmatprep.mubr.f32.mxu0 0.0
      %454 = vmatmul.mubr.f32.gmra.mrb[0].mxu0 %v213
      %v455 = vpop.f32.mrb[0].mxu0
      %v456 = vadd.f32 %v351, %v455
      %v457 = vpop.f32.mrb[0].mxu0
      %458 = vmatprep.mubr.f32.mxu0 0.0
      %459 = vmatmul.mubr.f32.gmra.mrb[0].mxu0 %v214
      %v460 = vpop.f32.mrb[0].mxu0
      %v461 = vadd.f32 %v353, %v460
      %v462 = vpop.f32.mrb[0].mxu0
      %463 = vmatprep.mubr.f32.mxu0 0.0
      %464 = vmatmul.mubr.f32.gmra.mrb[0].mxu0 %v215
      %v465 = vpop.f32.mrb[0].mxu0
      %v466 = vadd.f32 %v355, %v465
      %v467 = vpop.f32.mrb[0].mxu0
      %468 = vdwg.mxu0
      %v469 = vmul.f32 %v145, %v431
      %v470 = vmul.f32 %v146, %v436
      %v471 = vmul.f32 %v147, %v441
      %v472 = vmul.f32 %v148, %v446
      %v473 = vmul.f32 %v149, %v451
      %v474 = vmul.f32 %v150, %v456
      %v475 = vmul.f32 %v151, %v461
      %v476 = vmul.f32 %v152, %v466
      %v477 = vadd.f32 %v321, %v469
      %v478 = vadd.f32 %v322, %v470
      %v479 = vadd.f32 %v323, %v471
      %v480 = vadd.f32 %v324, %v472
      %v481 = vadd.f32 %v325, %v473
      %v482 = vadd.f32 %v326, %v474
      %v483 = vadd.f32 %v327, %v475
      %v484 = vadd.f32 %v328, %v476
      %v485 = vmul.f32 %v183, %v477
      %v486 = vmul.f32 %v183, %v478
      %v487 = vmul.f32 %v183, %v479
      %v488 = vmul.f32 %v183, %v480
      %v489 = vmul.f32 %v183, %v481
      %v490 = vmul.f32 %v183, %v482
      %v491 = vmul.f32 %v183, %v483
      %v492 = vmul.f32 %v183, %v484
      %v493 = vstv %s144
      %v494 = vmul.f32 %v493, %v169
      %v495 = vmul.f32 %v493, %v170
      %v496 = vmul.f32 %v493, %v171
      %v497 = vmul.f32 %v493, %v172
      %v498 = vmul.f32 %v493, %v173
      %v499 = vmul.f32 %v493, %v174
      %v500 = vmul.f32 %v493, %v175
      %v501 = vmul.f32 %v493, %v176
      %v502 = vadd.f32 %v485, %v494
      %v503 = vadd.f32 %v486, %v495
      %v504 = vadd.f32 %v487, %v496
      %v505 = vadd.f32 %v488, %v497
      %v506 = vadd.f32 %v489, %v498
      %v507 = vadd.f32 %v490, %v499
      %v508 = vadd.f32 %v491, %v500
      %v509 = vadd.f32 %v492, %v501
      %v510 = vmul.f32 %v502, %v186
      %v511 = vmul.f32 %v503, %v186
      %v512 = vmul.f32 %v504, %v186
      %v513 = vmul.f32 %v505, %v186
      %v514 = vmul.f32 %v506, %v186
      %v515 = vmul.f32 %v507, %v186
      %v516 = vmul.f32 %v508, %v186
      %v517 = vmul.f32 %v509, %v186
      %518 = vadd.xlane.f32.xlu0 %v510
      %v519 = vpop.xlane.xlu0 %518
      %520 = vadd.xlane.f32.xlu0 %v511
      %v521 = vpop.xlane.xlu0 %520
      %522 = vadd.xlane.f32.xlu0 %v512
      %v523 = vpop.xlane.xlu0 %522
      %524 = vadd.xlane.f32.xlu0 %v513
      %v525 = vpop.xlane.xlu0 %524
      %526 = vadd.xlane.f32.xlu0 %v514
      %v527 = vpop.xlane.xlu0 %526
      %528 = vadd.xlane.f32.xlu0 %v515
      %v529 = vpop.xlane.xlu0 %528
      %530 = vadd.xlane.f32.xlu0 %v516
      %v531 = vpop.xlane.xlu0 %530
      %532 = vadd.xlane.f32.xlu0 %v517
      %v533 = vpop.xlane.xlu0 %532
      %vm534 = vcmask 7168
      %535 = vst.msk [vmem:[%s8] sm:$0xff] %vm534, %v519
      %536 = vst.msk [vmem:[%s8 + $0x8] sm:$0xff] %vm534, %v521
      %537 = vst.msk [vmem:[%s8 + $0x10] sm:$0xff] %vm534, %v523
      %538 = vst.msk [vmem:[%s8 + $0x18] sm:$0xff] %vm534, %v525
      %539 = vst.msk [vmem:[%s8 + $0x20] sm:$0xff] %vm534, %v527
      %540 = vst.msk [vmem:[%s8 + $0x28] sm:$0xff] %vm534, %v529
      %541 = vst.msk [vmem:[%s8 + $0x30] sm:$0xff] %vm534, %v531
      %542 = vst.msk [vmem:[%s8 + $0x38] sm:$0xff] %vm534, %v533
      %543 = vst [vmem:[#allocation2] sm:$0xff] 0.0
      %544 = vst [vmem:[#allocation2 + $0x8] sm:$0xff] %v502
      %545 = vst [vmem:[#allocation2 + $0x10] sm:$0xff] %v503
      %546 = vst [vmem:[#allocation2 + $0x18] sm:$0xff] %v504
      %547 = vst [vmem:[#allocation2 + $0x20] sm:$0xff] %v505
      %548 = vst [vmem:[#allocation2 + $0x28] sm:$0xff] %v506
      %549 = vst [vmem:[#allocation2 + $0x30] sm:$0xff] %v507
      %550 = vst [vmem:[#allocation2 + $0x38] sm:$0xff] %v508
      %551 = vst [vmem:[#allocation2 + $0x40] sm:$0xff] %v509
      %552 = vst [vmem:[#allocation2 + $0x48] sm:$0xff] 0.0
      // Predicated region
      $region50: #{tpu_custom_call.1} parent=48 // pred_check
        %p553 = pneg %p98
      $region51: #{tpu_custom_call.1} parent=48 // pred_check_branch
        %555 = sbr.rel (%p553) target = $region53
      $region52: #{tpu_custom_call.1} parent=48 // pred_region
        %556 = vst [vmem:[#allocation16] sm:$0xff] 0.0
        %557 = vst [vmem:[#allocation16 + $0x8] sm:$0xff] %v502
        %558 = vst [vmem:[#allocation16 + $0x10] sm:$0xff] %v503
        %559 = vst [vmem:[#allocation16 + $0x18] sm:$0xff] %v504
        %560 = vst [vmem:[#allocation16 + $0x20] sm:$0xff] %v505
        %561 = vst [vmem:[#allocation16 + $0x28] sm:$0xff] %v506
        %562 = vst [vmem:[#allocation16 + $0x30] sm:$0xff] %v507
        %563 = vst [vmem:[#allocation16 + $0x38] sm:$0xff] %v508
        %564 = vst [vmem:[#allocation16 + $0x40] sm:$0xff] %v509
        %565 = vst [vmem:[#allocation16 + $0x48] sm:$0xff] 0.0
      $region53: #{tpu_custom_call.1} parent=48 // pred_fallthru
        _
    $region49: #{tpu_custom_call.1} parent=1 // pred_fallthru
      _
    %p566 = scmp.eq.s32.totalorder %s194, 1
    // Predicated region
    $region54: #{tpu_custom_call.1} parent=1 // pred_check
      %p567 = pneg %p566
    $region55: #{tpu_custom_call.1} parent=1 // pred_check_branch
      %569 = sbr.rel (%p567) target = $region57
    $region56: #{tpu_custom_call.1} parent=1 // pred_region
      %v570 = vld [vmem:[#allocation3 + $0x8] sm:$0xff]
      %v571 = vld [vmem:[#allocation3 + $0x10] sm:$0xff]
      %v572 = vld [vmem:[#allocation3 + $0x18] sm:$0xff]
      %v573 = vld [vmem:[#allocation3 + $0x20] sm:$0xff]
      %v574 = vld [vmem:[#allocation3 + $0x28] sm:$0xff]
      %v575 = vld [vmem:[#allocation3 + $0x30] sm:$0xff]
      %v576 = vld [vmem:[#allocation3 + $0x38] sm:$0xff]
      %v577 = vld [vmem:[#allocation3 + $0x40] sm:$0xff]
      %v578 = vld [vmem:[#allocation2] sm:$0xff]
      %v579 = vld [vmem:[#allocation2 + $0x8] sm:$0xff]
      %v580 = vld [vmem:[#allocation2 + $0x10] sm:$0xff]
      %v581 = vld [vmem:[#allocation2 + $0x18] sm:$0xff]
      %v582 = vld [vmem:[#allocation2 + $0x20] sm:$0xff]
      %v583 = vld [vmem:[#allocation2 + $0x28] sm:$0xff]
      %v584 = vld [vmem:[#allocation2 + $0x30] sm:$0xff]
      %v585 = vld [vmem:[#allocation2 + $0x38] sm:$0xff]
      %v586 = vld [vmem:[#allocation2 + $0x40] sm:$0xff]
      %v587 = vld [vmem:[#allocation2 + $0x48] sm:$0xff]
      %v588 = vmul.f32 %v579, 2.0
      %v589 = vmul.f32 %v580, 2.0
      %v590 = vmul.f32 %v581, 2.0
      %v591 = vmul.f32 %v582, 2.0
      %v592 = vmul.f32 %v583, 2.0
      %v593 = vmul.f32 %v584, 2.0
      %v594 = vmul.f32 %v585, 2.0
      %v595 = vmul.f32 %v586, 2.0
      %vm604 = vcmask 1040384
      %v605 = vrot.slane %v588, 7
      %v606 = vrot.slane %v589, 7
      %v607 = vsel %vm604, %v605, %v606
      %v608 = vrot.slane %v590, 7
      %v609 = vsel %vm604, %v606, %v608
      %v610 = vrot.slane %v591, 7
      %v611 = vsel %vm604, %v608, %v610
      %v612 = vrot.slane %v592, 7
      %v613 = vsel %vm604, %v610, %v612
      %v614 = vrot.slane %v593, 7
      %v615 = vsel %vm604, %v612, %v614
      %v616 = vrot.slane %v594, 7
      %v617 = vsel %vm604, %v614, %v616
      %v618 = vrot.slane %v595, 7
      %v619 = vsel %vm604, %v616, %v618
      %v629 = vsub.f32 %v579, %v605
      %v630 = vsub.f32 %v580, %v607
      %v631 = vsub.f32 %v581, %v609
      %v632 = vsub.f32 %v582, %v611
      %v633 = vsub.f32 %v583, %v613
      %v634 = vsub.f32 %v584, %v615
      %v635 = vsub.f32 %v585, %v617
      %v636 = vsub.f32 %v586, %v619
      %v637 = vsub.f32 %v587, %v618
      %vm647 = vcmask 1041408
      %v648 = vrot.slane %v578, 6
      %v649 = vrot.slane %v579, 6
      %v650 = vsel %vm647, %v648, %v649
      %v651 = vrot.slane %v580, 6
      %v652 = vsel %vm647, %v649, %v651
      %v653 = vrot.slane %v581, 6
      %v654 = vsel %vm647, %v651, %v653
      %v655 = vrot.slane %v582, 6
      %v656 = vsel %vm647, %v653, %v655
      %v657 = vrot.slane %v583, 6
      %v658 = vsel %vm647, %v655, %v657
      %v659 = vrot.slane %v584, 6
      %v660 = vsel %vm647, %v657, %v659
      %v661 = vrot.slane %v585, 6
      %v662 = vsel %vm647, %v659, %v661
      %v663 = vrot.slane %v586, 6
      %v664 = vsel %vm647, %v661, %v663
      %v674 = vadd.f32 %v629, %v650
      %v675 = vadd.f32 %v630, %v652
      %v676 = vadd.f32 %v631, %v654
      %v677 = vadd.f32 %v632, %v656
      %v678 = vadd.f32 %v633, %v658
      %v679 = vadd.f32 %v634, %v660
      %v680 = vadd.f32 %v635, %v662
      %v681 = vadd.f32 %v636, %v664
      %v682 = vadd.f32 %v637, %v663
      %v683 = vmul.f32 %v674, 0.01
      %v684 = vmul.f32 %v675, 0.01
      %v685 = vmul.f32 %v676, 0.01
      %v686 = vmul.f32 %v677, 0.01
      %v687 = vmul.f32 %v678, 0.01
      %v688 = vmul.f32 %v679, 0.01
      %v689 = vmul.f32 %v680, 0.01
      %v690 = vmul.f32 %v681, 0.01
      %v691 = vmul.f32 %v682, 0.01
      %v692 = vsub.f32 %v588, %v570
      %v693 = vsub.f32 %v589, %v571
      %v694 = vsub.f32 %v590, %v572
      %v695 = vsub.f32 %v591, %v573
      %v696 = vsub.f32 %v592, %v574
      %v697 = vsub.f32 %v593, %v575
      %v698 = vsub.f32 %v594, %v576
      %v699 = vsub.f32 %v595, %v577
      %vm709 = vcmask 1046528
      %v710 = vrot.slane %v683, 1
      %v711 = vrot.slane %v684, 1
      %v712 = vsel %vm709, %v710, %v711
      %v713 = vrot.slane %v685, 1
      %v714 = vsel %vm709, %v711, %v713
      %v715 = vrot.slane %v686, 1
      %v716 = vsel %vm709, %v713, %v715
      %v717 = vrot.slane %v687, 1
      %v718 = vsel %vm709, %v715, %v717
      %v719 = vrot.slane %v688, 1
      %v720 = vsel %vm709, %v717, %v719
      %v721 = vrot.slane %v689, 1
      %v722 = vsel %vm709, %v719, %v721
      %v723 = vrot.slane %v690, 1
      %v724 = vsel %vm709, %v721, %v723
      %v725 = vrot.slane %v691, 1
      %v726 = vsel %vm709, %v723, %v725
      %735 = vmatprep.subr.mxu0 0.0
      %736 = vmatpush1.msra.mxu0 %v153
      %737 = vmatprep.subr.mxu0 0.0
      %738 = vmatpush1.msra.mxu0 %v154
      %739 = vmatprep.subr.mxu0 0.0
      %740 = vmatpush1.msra.mxu0 %v155
      %741 = vmatprep.subr.mxu0 0.0
      %742 = vmatpush1.msra.mxu0 %v156
      %743 = vmatprep.subr.mxu0 0.0
      %744 = vmatpush1.msra.mxu0 %v157
      %745 = vmatprep.subr.mxu0 0.0
      %746 = vmatpush1.msra.mxu0 %v158
      %747 = vmatprep.subr.mxu0 0.0
      %748 = vmatpush1.msra.mxu0 %v159
      %749 = vmatprep.subr.mxu0 0.0
      %750 = vmatpush1.msra.mxu0 %v160
      %751 = vmatprep.subr.mxu0 0.0
      %752 = vmatpush1.msra.mxu0 %v161
      %753 = vmatprep.subr.mxu0 0.0
      %754 = vmatpush1.msra.mxu0 %v162
      %755 = vmatprep.subr.mxu0 0.0
      %756 = vmatpush1.msra.mxu0 %v163
      %757 = vmatprep.subr.mxu0 0.0
      %758 = vmatpush1.msra.mxu0 %v164
      %759 = vmatprep.subr.mxu0 0.0
      %760 = vmatpush1.msra.mxu0 %v165
      %761 = vmatprep.subr.mxu0 0.0
      %762 = vmatpush1.msra.mxu0 %v166
      %763 = vmatprep.subr.mxu0 0.0
      %764 = vmatpush1.msra.mxu0 %v167
      %765 = vmatprep.subr.mxu0 0.0
      %766 = vmatpush1.msra.mxu0 %v168
      %767 = vmatprep.subr.mxu0 0.0
      %768 = vmatpush1.msra.mxu0 0.0
      %769 = vmatprep.subr.mxu0 0.0
      %770 = vmatpush1.msra.mxu0 0.0
      %771 = vmatprep.subr.mxu0 0.0
      %772 = vmatpush1.msra.mxu0 0.0
      %773 = vmatprep.subr.mxu0 0.0
      %774 = vmatpush1.msra.mxu0 0.0
      %775 = vmatprep.subr.mxu0 0.0
      %776 = vmatpush1.msra.mxu0 0.0
      %777 = vmatprep.subr.mxu0 0.0
      %778 = vmatpush1.msra.mxu0 0.0
      %779 = vmatprep.subr.mxu0 0.0
      %780 = vmatpush1.msra.mxu0 0.0
      %781 = vmatprep.subr.mxu0 0.0
      %782 = vmatpush1.msra.mxu0 0.0
      %783 = vmatprep.subr.mxu0 0.0
      %784 = vmatpush1.msra.mxu0 0.0
      %785 = vmatprep.subr.mxu0 0.0
      %786 = vmatpush1.msra.mxu0 0.0
      %787 = vmatprep.subr.mxu0 0.0
      %788 = vmatpush1.msra.mxu0 0.0
      %789 = vmatprep.subr.mxu0 0.0
      %790 = vmatpush1.msra.mxu0 0.0
      %791 = vmatprep.subr.mxu0 0.0
      %792 = vmatpush1.msra.mxu0 0.0
      %793 = vmatprep.subr.mxu0 0.0
      %794 = vmatpush1.msra.mxu0 0.0
      %795 = vmatprep.subr.mxu0 0.0
      %796 = vmatpush1.msra.mxu0 0.0
      %797 = vmatprep.subr.mxu0 0.0
      %798 = vmatpush1.msra.mxu0 0.0
      %799 = vmatprep.mubr.f32.mxu0 0.0
      %800 = vmatmul.mubr.f32.gmra.mrb[0].mxu0 %v579
      %v801 = vpop.f32.mrb[0].mxu0
      %v802 = vadd.f32 %v712, %v801
      %v803 = vpop.f32.mrb[0].mxu0
      %804 = vmatprep.mubr.f32.mxu0 0.0
      %805 = vmatmul.mubr.f32.gmra.mrb[0].mxu0 %v580
      %v806 = vpop.f32.mrb[0].mxu0
      %v807 = vadd.f32 %v714, %v806
      %v808 = vpop.f32.mrb[0].mxu0
      %809 = vmatprep.mubr.f32.mxu0 0.0
      %810 = vmatmul.mubr.f32.gmra.mrb[0].mxu0 %v581
      %v811 = vpop.f32.mrb[0].mxu0
      %v812 = vadd.f32 %v716, %v811
      %v813 = vpop.f32.mrb[0].mxu0
      %814 = vmatprep.mubr.f32.mxu0 0.0
      %815 = vmatmul.mubr.f32.gmra.mrb[0].mxu0 %v582
      %v816 = vpop.f32.mrb[0].mxu0
      %v817 = vadd.f32 %v718, %v816
      %v818 = vpop.f32.mrb[0].mxu0
      %819 = vmatprep.mubr.f32.mxu0 0.0
      %820 = vmatmul.mubr.f32.gmra.mrb[0].mxu0 %v583
      %v821 = vpop.f32.mrb[0].mxu0
      %v822 = vadd.f32 %v720, %v821
      %v823 = vpop.f32.mrb[0].mxu0
      %824 = vmatprep.mubr.f32.mxu0 0.0
      %825 = vmatmul.mubr.f32.gmra.mrb[0].mxu0 %v584
      %v826 = vpop.f32.mrb[0].mxu0
      %v827 = vadd.f32 %v722, %v826
      %v828 = vpop.f32.mrb[0].mxu0
      %829 = vmatprep.mubr.f32.mxu0 0.0
      %830 = vmatmul.mubr.f32.gmra.mrb[0].mxu0 %v585
      %v831 = vpop.f32.mrb[0].mxu0
      %v832 = vadd.f32 %v724, %v831
      %v833 = vpop.f32.mrb[0].mxu0
      %834 = vmatprep.mubr.f32.mxu0 0.0
      %835 = vmatmul.mubr.f32.gmra.mrb[0].mxu0 %v586
      %v836 = vpop.f32.mrb[0].mxu0
      %v837 = vadd.f32 %v726, %v836
      %v838 = vpop.f32.mrb[0].mxu0
      %839 = vdwg.mxu0
      %v840 = vmul.f32 %v145, %v802
      %v841 = vmul.f32 %v146, %v807
      %v842 = vmul.f32 %v147, %v812
      %v843 = vmul.f32 %v148, %v817
      %v844 = vmul.f32 %v149, %v822
      %v845 = vmul.f32 %v150, %v827
      %v846 = vmul.f32 %v151, %v832
      %v847 = vmul.f32 %v152, %v837
      %v848 = vadd.f32 %v692, %v840
      %v849 = vadd.f32 %v693, %v841
      %v850 = vadd.f32 %v694, %v842
      %v851 = vadd.f32 %v695, %v843
      %v852 = vadd.f32 %v696, %v844
      %v853 = vadd.f32 %v697, %v845
      %v854 = vadd.f32 %v698, %v846
      %v855 = vadd.f32 %v699, %v847
      %v856 = vmul.f32 %v183, %v848
      %v857 = vmul.f32 %v183, %v849
      %v858 = vmul.f32 %v183, %v850
      %v859 = vmul.f32 %v183, %v851
      %v860 = vmul.f32 %v183, %v852
      %v861 = vmul.f32 %v183, %v853
      %v862 = vmul.f32 %v183, %v854
      %v863 = vmul.f32 %v183, %v855
      %v864 = vstv %s144
      %v865 = vmul.f32 %v864, %v169
      %v866 = vmul.f32 %v864, %v170
      %v867 = vmul.f32 %v864, %v171
      %v868 = vmul.f32 %v864, %v172
      %v869 = vmul.f32 %v864, %v173
      %v870 = vmul.f32 %v864, %v174
      %v871 = vmul.f32 %v864, %v175
      %v872 = vmul.f32 %v864, %v176
      %v873 = vadd.f32 %v856, %v865
      %v874 = vadd.f32 %v857, %v866
      %v875 = vadd.f32 %v858, %v867
      %v876 = vadd.f32 %v859, %v868
      %v877 = vadd.f32 %v860, %v869
      %v878 = vadd.f32 %v861, %v870
      %v879 = vadd.f32 %v862, %v871
      %v880 = vadd.f32 %v863, %v872
      %v881 = vmul.f32 %v873, %v186
      %v882 = vmul.f32 %v874, %v186
      %v883 = vmul.f32 %v875, %v186
      %v884 = vmul.f32 %v876, %v186
      %v885 = vmul.f32 %v877, %v186
      %v886 = vmul.f32 %v878, %v186
      %v887 = vmul.f32 %v879, %v186
      %v888 = vmul.f32 %v880, %v186
      %889 = vadd.xlane.f32.xlu0 %v881
      %v890 = vpop.xlane.xlu0 %889
      %891 = vadd.xlane.f32.xlu0 %v882
      %v892 = vpop.xlane.xlu0 %891
      %893 = vadd.xlane.f32.xlu0 %v883
      %v894 = vpop.xlane.xlu0 %893
      %895 = vadd.xlane.f32.xlu0 %v884
      %v896 = vpop.xlane.xlu0 %895
      %897 = vadd.xlane.f32.xlu0 %v885
      %v898 = vpop.xlane.xlu0 %897
      %899 = vadd.xlane.f32.xlu0 %v886
      %v900 = vpop.xlane.xlu0 %899
      %901 = vadd.xlane.f32.xlu0 %v887
      %v902 = vpop.xlane.xlu0 %901
      %903 = vadd.xlane.f32.xlu0 %v888
      %v904 = vpop.xlane.xlu0 %903
      %vm905 = vcmask 7168
      %906 = vst.msk [vmem:[%s8] sm:$0xff] %vm905, %v890
      %907 = vst.msk [vmem:[%s8 + $0x8] sm:$0xff] %vm905, %v892
      %908 = vst.msk [vmem:[%s8 + $0x10] sm:$0xff] %vm905, %v894
      %909 = vst.msk [vmem:[%s8 + $0x18] sm:$0xff] %vm905, %v896
      %910 = vst.msk [vmem:[%s8 + $0x20] sm:$0xff] %vm905, %v898
      %911 = vst.msk [vmem:[%s8 + $0x28] sm:$0xff] %vm905, %v900
      %912 = vst.msk [vmem:[%s8 + $0x30] sm:$0xff] %vm905, %v902
      %913 = vst.msk [vmem:[%s8 + $0x38] sm:$0xff] %vm905, %v904
      %914 = vst [vmem:[#allocation3] sm:$0xff] 0.0
      %915 = vst [vmem:[#allocation3 + $0x8] sm:$0xff] %v873
      %916 = vst [vmem:[#allocation3 + $0x10] sm:$0xff] %v874
      %917 = vst [vmem:[#allocation3 + $0x18] sm:$0xff] %v875
      %918 = vst [vmem:[#allocation3 + $0x20] sm:$0xff] %v876
      %919 = vst [vmem:[#allocation3 + $0x28] sm:$0xff] %v877
      %920 = vst [vmem:[#allocation3 + $0x30] sm:$0xff] %v878
      %921 = vst [vmem:[#allocation3 + $0x38] sm:$0xff] %v879
      %922 = vst [vmem:[#allocation3 + $0x40] sm:$0xff] %v880
      %923 = vst [vmem:[#allocation3 + $0x48] sm:$0xff] 0.0
      // Predicated region
      $region58: #{tpu_custom_call.1} parent=56 // pred_check
        %p924 = pneg %p98
      $region59: #{tpu_custom_call.1} parent=56 // pred_check_branch
        %926 = sbr.rel (%p924) target = $region61
      $region60: #{tpu_custom_call.1} parent=56 // pred_region
        %927 = vst [vmem:[#allocation16] sm:$0xff] 0.0
        %928 = vst [vmem:[#allocation16 + $0x8] sm:$0xff] %v873
        %929 = vst [vmem:[#allocation16 + $0x10] sm:$0xff] %v874
        %930 = vst [vmem:[#allocation16 + $0x18] sm:$0xff] %v875
        %931 = vst [vmem:[#allocation16 + $0x20] sm:$0xff] %v876
        %932 = vst [vmem:[#allocation16 + $0x28] sm:$0xff] %v877
        %933 = vst [vmem:[#allocation16 + $0x30] sm:$0xff] %v878
        %934 = vst [vmem:[#allocation16 + $0x38] sm:$0xff] %v879
        %935 = vst [vmem:[#allocation16 + $0x40] sm:$0xff] %v880
        %936 = vst [vmem:[#allocation16 + $0x48] sm:$0xff] 0.0
      $region61: #{tpu_custom_call.1} parent=56 // pred_fallthru
        _
    $region57: #{tpu_custom_call.1} parent=1 // pred_fallthru
      _
    // Predicated region
    $region62: #{tpu_custom_call.1} parent=1 // pred_check
      _
    $region63: #{tpu_custom_call.1} parent=1 // pred_check_branch
      %938 = sbr.rel (0) target = $region65
    $region64: #{tpu_custom_call.1} parent=1 // pred_region
      %s940 = ssub.s32 1280, 1280
      %941 = vsyncadd [#allocation9], %s940
      %s942 = sshll.u32 [#allocation16], 4
      %s943 = int_to_ptr.vmem [resolvable:$true] %s942
      %948 = dma.vmem_to_hbm [thread:$0]  %s943, 1280, %s7, [#allocation9], 128, 128, 8
    $region65: #{tpu_custom_call.1} parent=1 // pred_fallthru
      _
    // Predicated region
    $region66: #{tpu_custom_call.1} parent=1 // pred_check
      _
    $region67: #{tpu_custom_call.1} parent=1 // pred_check_branch
      %950 = sbr.rel (0) target = $region69
    $region68: #{tpu_custom_call.1} parent=1 // pred_region
      _
    $region69: #{tpu_custom_call.1} parent=1 // pred_fallthru
      _
    // Predicated region
    $region70: #{tpu_custom_call.1} parent=1 // pred_check
      _
    $region71: #{tpu_custom_call.1} parent=1 // pred_check_branch
      %952 = sbr.rel (0) target = $region73
    $region72: #{tpu_custom_call.1} parent=1 // pred_region
      %953 = dma.done [#allocation9], 1280
    $region73: #{tpu_custom_call.1} parent=1 // pred_fallthru
      _
    // Predicated region
    $region74: #{tpu_custom_call.1} parent=1 // pred_check
      _
    $region75: #{tpu_custom_call.1} parent=1 // pred_check_branch
      %955 = sbr.rel (0) target = $region77
    $region76: #{tpu_custom_call.1} parent=1 // pred_region
      _
    $region77: #{tpu_custom_call.1} parent=1 // pred_fallthru
      _
    %956 = vsyncpa [#allocation8], 1
    %957 = vsyncpa [#allocation11], 1
    %958 = vsyncpa [#allocation14], 1
    %959 = vsyncpa [#allocation9], 1

</llo_original>
